<compile_context>
chip_gen: v6e
topology: v6e:2x2x1
jax: 0.10.0
libtpu: 0.0.40
codegen_flags: <defaults>
</compile_context>

<pallas_src>
import jax
import jax.numpy as jnp
from jax.experimental import pallas as pl
from jax.experimental.pallas import tpu as pltpu

HIDDEN_DIM = 32
PRELU_ALPHA = 0.1          # literal torch.tensor(0.1) in the reference forward
LANE = 128                 # TPU lane width
DEFAULT_TILE_ROWS = 4096   # (4096, 128) f32 = 2 MiB per buffer


# ----------------------------------------------------------------------------
# Pallas kernel: elementwise PReLU on two lane-dense (block_rows, 128) tiles.
# ----------------------------------------------------------------------------
def _prelu2_kernel(src_ref, snk_ref, src_out_ref, snk_out_ref):
    alpha = jnp.asarray(PRELU_ALPHA, dtype=src_ref.dtype)
    x = src_ref[...]
    src_out_ref[...] = jnp.maximum(x, alpha * x)   # == PReLU for 0 < alpha < 1
    y = snk_ref[...]
    snk_out_ref[...] = jnp.maximum(y, alpha * y)


def _lane_dense(x):
    """Row-major reshape to (rows, 128); zero-copy unless size % 128 != 0."""
    total = x.size
    flat = x.reshape(-1)
    pad = (-total) % LANE
    if pad:
        # Only for ragged totals (<=127 extra elements); PReLU(0) == 0.
        flat = jnp.pad(flat, (0, pad))
    rows = (total + pad) // LANE
    return flat.reshape(rows, LANE), total


def _choose_block(rows, dtype, tile_rows):
    """Pick (block_rows, grid) — lane-dense, sublane-aligned, >=2 steps when useful."""
    itemsize = jnp.dtype(dtype).itemsize
    sublane_mult = max(8, 32 // itemsize)   # f32: 8, bf16: 16, int8: 32
    if rows <= 2 * sublane_mult:
        # Tiny input: one full-array block (exempt from the (8,128) rule).
        return rows, 1
    # Otherwise emit at least 2 grid steps (keeps both v7x TCs busy) with a
    # sublane-aligned block.  Last block may be partial; Pallas masks it.
    half = max(sublane_mult, ((rows + 1) // 2) // sublane_mult * sublane_mult)
    block_rows = min(tile_rows, half)
    return block_rows, pl.cdiv(rows, block_rows)


def source_sink_emb_layer(source_emb,
                          sink_emb,
                          source_edge_index=None,   # unused (dead code in ref)
                          sink_edge_index=None,     # unused (dead code in ref)
                          *,
                          tile_rows=DEFAULT_TILE_ROWS):
    """Pallas implementation of SourceSinkEmbLayer.forward."""
    # TODO(synk): GATConv message passing, dropout and combine_emb are dead
    # code in the reference forward (results overwritten before return);
    # they are intentionally not executed here.
    assert source_emb.shape == sink_emb.shape
    assert source_emb.dtype == sink_emb.dtype
    shape, dtype = source_emb.shape, source_emb.dtype

    src2d, total = _lane_dense(source_emb)
    snk2d, _ = _lane_dense(sink_emb)
    rows = src2d.shape[0]
    block_rows, grid_n = _choose_block(rows, dtype, tile_rows)

    spec = pl.BlockSpec((block_rows, LANE), lambda i: (i, 0))
    itemsize = jnp.dtype(dtype).itemsize
    cost = pl.CostEstimate(
        flops=4 * total,                      # mul + max per element, 2 arrays
        transcendentals=0,
        bytes_accessed=4 * total * itemsize,  # 2 arrays read + 2 written
    )

    src_out, snk_out = pl.pallas_call(
        _prelu2_kernel,
        out_shape=(jax.ShapeDtypeStruct(src2d.shape, dtype),
                   jax.ShapeDtypeStruct(snk2d.shape, dtype)),
        grid_spec=pltpu.PrefetchScalarGridSpec(
            num_scalar_prefetch=0,
            grid=(grid_n,),
            in_specs=[spec, spec],
            out_specs=(spec, spec),
        ),
        compiler_params=pltpu.CompilerParams(
            dimension_semantics=("parallel",),
            vmem_limit_bytes=32 * 1024 * 1024,
        ),
        cost_estimate=cost,
    )(src2d, snk2d)

    def _back(y):
        flat = y.reshape(-1)
        if flat.shape[0] != total:
            flat = flat[:total]
        return flat.reshape(shape)

    return _back(src_out), _back(snk_out)


# ----------------------------------------------------------------------------
# Deterministic (unused) GATConv parameter initialization, mirroring the
# module's parameter set even though its output never reaches the return.
# ----------------------------------------------------------------------------
def init_gatconv_params(key, hidden_dim=HIDDEN_DIM):
    k_w, k_a = jax.random.split(key)
    return {
        "lin_weight": jax.random.normal(k_w, (hidden_dim, hidden_dim),
                                        jnp.float32) * 0.05,
        "att": jax.random.normal(k_a, (2 * hidden_dim,), jnp.float32) * 0.05,
    }


def _prelu_ref(x):
    return jnp.where(x > 0, x, PRELU_ALPHA * x)


if __name__ == "__main__":
    key = jax.random.PRNGKey(0)
    k_src, k_snk, k_e1, k_e2, k_p1, k_p2 = jax.random.split(key, 6)

    num_nodes = 64
    num_edges = 128

    source_emb = jax.random.normal(k_src, (num_nodes, HIDDEN_DIM), jnp.float32)
    sink_emb = jax.random.normal(k_snk, (num_nodes, HIDDEN_DIM), jnp.float32)
    source_edge_index = jax.random.randint(k_e1, (2, num_edges), 0, num_nodes,
                                           dtype=jnp.int32)
    sink_edge_index = jax.random.randint(k_e2, (2, num_edges), 0, num_nodes,
                                         dtype=jnp.int32)

    # Parameters of the two GATConv sub-modules (dead in forward, but built).
    source_conv_params = init_gatconv_params(k_p1)
    sink_conv_params = init_gatconv_params(k_p2)

    fwd = jax.jit(source_sink_emb_layer)
    new_source, new_sink = fwd(source_emb, sink_emb,
                               source_edge_index, sink_edge_index)
    jax.block_until_ready((new_source, new_sink))

    assert new_source.shape == source_emb.shape
    assert new_sink.shape == sink_emb.shape
    assert jnp.allclose(new_source, _prelu_ref(source_emb), atol=1e-6)
    assert jnp.allclose(new_sink, _prelu_ref(sink_emb), atol=1e-6)

    # Gridded path with a partial last block (3000*32/128 = 750 rows, tile 256).
    big_n = 3000
    big_src = jax.random.normal(k_e1, (big_n, HIDDEN_DIM), jnp.float32)
    big_snk = jax.random.normal(k_e2, (big_n, HIDDEN_DIM), jnp.float32)
    big_out_src, big_out_snk = jax.jit(
        lambda a, b: source_sink_emb_layer(a, b, tile_rows=256))(big_src, big_snk)
    jax.block_until_ready((big_out_src, big_out_snk))
    assert jnp.allclose(big_out_src, _prelu_ref(big_src), atol=1e-6)
    assert jnp.allclose(big_out_snk, _prelu_ref(big_snk), atol=1e-6)

    # Ragged path (element count not a multiple of 128 -> tiny lane pad).
    odd_n = 5
    odd_src = jax.random.normal(k_p1, (odd_n, HIDDEN_DIM), jnp.float32)
    odd_snk = jax.random.normal(k_p2, (odd_n, HIDDEN_DIM), jnp.float32)
    odd_out_src, odd_out_snk = jax.jit(source_sink_emb_layer)(odd_src, odd_snk)
    jax.block_until_ready((odd_out_src, odd_out_snk))
    assert jnp.allclose(odd_out_src, _prelu_ref(odd_src), atol=1e-6)
    assert jnp.allclose(odd_out_snk, _prelu_ref(odd_snk), atol=1e-6)

    print("KERNEL_OK")
</pallas_src>

<mosaic_0001>
module attributes {stable_mosaic.version = 11 : i64} {
  func.func @_prelu2_kernel(%arg0: i32, %arg1: memref<16x128xf32, #tpu.memory_space<vmem>>, %arg2: memref<16x128xf32, #tpu.memory_space<vmem>>, %arg3: memref<16x128xf32, #tpu.memory_space<vmem>>, %arg4: memref<16x128xf32, #tpu.memory_space<vmem>>) attributes {dimension_semantics = [#tpu.dimension_semantics<parallel>], iteration_bounds = array<i64: 1>, scalar_prefetch = 0 : i64, scratch_operands = 0 : i64, tpu.core_type = #tpu.core_type<tc>, window_params = [{transform_indices = @transform_0, window_bounds = array<i64: 16, 128>}, {transform_indices = @transform_1, window_bounds = array<i64: 16, 128>}, {transform_indices = @transform_2, window_bounds = array<i64: 16, 128>}, {transform_indices = @transform_3, window_bounds = array<i64: 16, 128>}]} {
    %c0 = arith.constant 0 : index
    %c0_0 = arith.constant 0 : index
    %0 = vector.load %arg1[%c0, %c0_0] : memref<16x128xf32, #tpu.memory_space<vmem>>, vector<16x128xf32>
    %cst = arith.constant 1.000000e-01 : f32
    %1 = vector.broadcast %cst : f32 to vector<16x128xf32>
    %2 = arith.mulf %1, %0 : vector<16x128xf32>
    %3 = arith.maximumf %0, %2 : vector<16x128xf32>
    %c0_1 = arith.constant 0 : index
    %c0_2 = arith.constant 0 : index
    %4 = vector.load %arg3[%c0_1, %c0_2] : memref<16x128xf32, #tpu.memory_space<vmem>>, vector<16x128xf32>
    tpu.vector_store %arg3[%c0_1, %c0_2], %3 {strides = array<i32>} : memref<16x128xf32, #tpu.memory_space<vmem>>, vector<16x128xf32>,
    %c0_3 = arith.constant 0 : index
    %c0_4 = arith.constant 0 : index
    %5 = vector.load %arg2[%c0_3, %c0_4] : memref<16x128xf32, #tpu.memory_space<vmem>>, vector<16x128xf32>
    %cst_5 = arith.constant 1.000000e-01 : f32
    %6 = vector.broadcast %cst_5 : f32 to vector<16x128xf32>
    %7 = arith.mulf %6, %5 : vector<16x128xf32>
    %8 = arith.maximumf %5, %7 : vector<16x128xf32>
    %c0_6 = arith.constant 0 : index
    %c0_7 = arith.constant 0 : index
    %9 = vector.load %arg4[%c0_6, %c0_7] : memref<16x128xf32, #tpu.memory_space<vmem>>, vector<16x128xf32>
    tpu.vector_store %arg4[%c0_6, %c0_7], %8 {strides = array<i32>} : memref<16x128xf32, #tpu.memory_space<vmem>>, vector<16x128xf32>,
    return
  }
  func.func @transform_0(%arg0: i32) -> (i32, i32) {
    %c0_i32 = arith.constant 0 : i32
    %c0_i32_0 = arith.constant 0 : i32
    return %arg0, %c0_i32 : i32, i32
  }
  func.func @transform_1(%arg0: i32) -> (i32, i32) {
    %c0_i32 = arith.constant 0 : i32
    %c0_i32_0 = arith.constant 0 : i32
    return %arg0, %c0_i32 : i32, i32
  }
  func.func @transform_2(%arg0: i32) -> (i32, i32) {
    %c0_i32 = arith.constant 0 : i32
    %c0_i32_0 = arith.constant 0 : i32
    return %arg0, %c0_i32 : i32, i32
  }
  func.func @transform_3(%arg0: i32) -> (i32, i32) {
    %c0_i32 = arith.constant 0 : i32
    %c0_i32_0 = arith.constant 0 : i32
    return %arg0, %c0_i32 : i32, i32
  }
}

</mosaic_0001>

<llo_original>
// kernel: source_sink_emb_layer.1
$region0: #{source_sink_emb_layer.1}
  #allocation0 [shape = 'u32[]', space=smem, size = 0x4, offset = 0x4, fixed_abs, tag = 'smem constant byte address 0x4 - core index']
  #allocation1 [shape = 'u32[144,128]{1,0:T(1,128)}', space=vmem, size = 0x12000, scoped, tag = 'internal scratch']
  %s0 = inlined_call_operand.vmem [shape: f32[16,128], index: 0, kind: input, shape index: {}]
  %s1 = inlined_call_operand.vmem [shape: f32[16,128], index: 1, kind: input, shape index: {}]
  %s2 = inlined_call_operand.vmem [shape: f32[16,128], index: 2, kind: output, shape index: {0}]
  %s3 = inlined_call_operand.vmem [shape: f32[16,128], index: 3, kind: output, shape index: {1}]
  %4 = xla_tuple %s2, %s3
  %s5 = sld [smem:[#allocation0]]
  $region26: #{source_sink_emb_layer.1} parent=0
    _
  %s7 = ssub.s32 1, %s5
  %s8 = scalar_select 0, %s7, %s5
  // Predicated region
  $region2: #{source_sink_emb_layer.1} parent=0 // pred_check
    _
  $region3: #{source_sink_emb_layer.1} parent=0 // pred_check_branch
    %10 = sbr.rel (0) target = $region5
  $region4: #{source_sink_emb_layer.1} parent=0 // pred_region
    _
  $region5: #{source_sink_emb_layer.1} parent=0 // pred_fallthru
    _
  // Predicated region
  $region6: #{source_sink_emb_layer.1} parent=0 // pred_check
    _
  $region7: #{source_sink_emb_layer.1} parent=0 // pred_check_branch
    %12 = sbr.rel (0) target = $region9
  $region8: #{source_sink_emb_layer.1} parent=0 // pred_region
    _
  $region9: #{source_sink_emb_layer.1} parent=0 // pred_fallthru
    _
  %v13 = vld [vmem:[%s0] sm:$0xff]
  %v14 = vld [vmem:[%s0 + $0x8] sm:$0xff]
  %v15 = vmul.f32 %v13, 0.1
  %v16 = vmul.f32 %v14, 0.1
  %v17 = vmax.f32 %v13, %v15
  %v18 = vmax.f32 %v14, %v16
  %19 = vst [vmem:[%s2] sm:$0xff] %v17
  %20 = vst [vmem:[%s2 + $0x8] sm:$0xff] %v18
  %v21 = vld [vmem:[%s1] sm:$0xff]
  %v22 = vld [vmem:[%s1 + $0x8] sm:$0xff]
  %v23 = vmul.f32 %v21, 0.1
  %v24 = vmul.f32 %v22, 0.1
  %v25 = vmax.f32 %v21, %v23
  %v26 = vmax.f32 %v22, %v24
  %27 = vst [vmem:[%s3] sm:$0xff] %v25
  %28 = vst [vmem:[%s3 + $0x8] sm:$0xff] %v26
  // Predicated region
  $region10: #{source_sink_emb_layer.1} parent=0 // pred_check
    _
  $region11: #{source_sink_emb_layer.1} parent=0 // pred_check_branch
    %30 = sbr.rel (0) target = $region13
  $region12: #{source_sink_emb_layer.1} parent=0 // pred_region
    _
  $region13: #{source_sink_emb_layer.1} parent=0 // pred_fallthru
    _
  // Predicated region
  $region14: #{source_sink_emb_layer.1} parent=0 // pred_check
    _
  $region15: #{source_sink_emb_layer.1} parent=0 // pred_check_branch
    %32 = sbr.rel (0) target = $region17
  $region16: #{source_sink_emb_layer.1} parent=0 // pred_region
    _
  $region17: #{source_sink_emb_layer.1} parent=0 // pred_fallthru
    _
  // Predicated region
  $region18: #{source_sink_emb_layer.1} parent=0 // pred_check
    _
  $region19: #{source_sink_emb_layer.1} parent=0 // pred_check_branch
    %34 = sbr.rel (0) target = $region21
  $region20: #{source_sink_emb_layer.1} parent=0 // pred_region
    _
  $region21: #{source_sink_emb_layer.1} parent=0 // pred_fallthru
    _
  // Predicated region
  $region22: #{source_sink_emb_layer.1} parent=0 // pred_check
    _
  $region23: #{source_sink_emb_layer.1} parent=0 // pred_check_branch
    %36 = sbr.rel (0) target = $region25
  $region24: #{source_sink_emb_layer.1} parent=0 // pred_region
    _
  $region25: #{source_sink_emb_layer.1} parent=0 // pred_fallthru
    _

</llo_original>
